<compile_context>
chip_gen: v5e
topology: v5e:2x2
jax: 0.10.0
libtpu: 0.0.40
codegen_flags: <defaults>
</compile_context>

<pallas_src>
import jax
import jax.numpy as jnp
from jax.experimental import pallas as pl
from jax.experimental.pallas import tpu as pltpu


def _round_up(x, m):
    return ((x + m - 1) // m) * m


def _biasmf_kernel(ue_ref, ve_ref, bias_ref, out_ref):
    # ue_ref, ve_ref : (Dp, TB) gathered embedding columns (lanes = batch)
    # bias_ref       : (2, TB)  row 0 = user_bias + mu, row 1 = item_bias
    # out_ref        : (1, TB)  lane-dense output block
    # Multiply fused into the sublane (XLU) reduce; VPU adds are free filler.
    dots = jnp.sum(ue_ref[...] * ve_ref[...], axis=0, keepdims=True)   # (1, TB)
    out_ref[...] = bias_ref[0:1, :] + bias_ref[1:2, :] + dots


def _pick_tb(batch, dp, max_tb=8192):
    """Pick the batch-tile width (multiple of 128) from VMEM capacity."""
    try:
        vmem_bytes = int(pltpu.get_tpu_info().vmem_capacity_bytes)
    except Exception:  # CPU interpret mode / older API — conservative fallback.
        vmem_bytes = 64 * 1024 * 1024
    # Double-buffered f32 embedding inputs dominate the working set:
    #   2 inputs x 2 buffers x Dp x tb x 4 B  <=  ~1/4 of physical VMEM.
    budget = vmem_bytes // 4
    per_lane = 2 * 2 * dp * 4
    tb = (budget // per_lane) // 128 * 128
    tb = max(128, min(tb, max_tb))
    # Keep >= 2 grid tiles for megacore (v7x) when the batch is big enough.
    if batch > 2 * 128:
        tb = min(tb, _round_up((batch + 1) // 2, 128))
    # Never larger than the padded batch itself.
    tb = min(tb, _round_up(batch, 128))
    return tb


def biasmf_forward(u, v, user_embd, item_embd, user_bias, item_bias, mu, *, tb=None):
    """Pallas implementation of BiasMF.forward(u, v)."""
    B = int(u.shape[0])
    n_users, D = user_embd.shape
    Dp = _round_up(D, 8)

    if tb is None:
        tb = _pick_tb(B, Dp)
    Bp = _round_up(B, tb)
    n_tiles = Bp // tb

    mu_f = jnp.asarray(mu, jnp.float32)

    # --- one-time table transpose/pad (table-sized, not batch-sized) ----------
    ue_table = jnp.pad(user_embd.astype(jnp.float32).T, ((0, Dp - D), (0, 0)))  # (Dp, n_users)
    ve_table = jnp.pad(item_embd.astype(jnp.float32).T, ((0, Dp - D), (0, 0)))  # (Dp, n_items)
    ub_table = user_bias.astype(jnp.float32).reshape(-1)   # works for (N,1) or (N,)
    vb_table = item_bias.astype(jnp.float32).reshape(-1)

    # --- pad the index vectors (index 0 is valid; padded columns discarded) ---
    u_p = jnp.pad(u.astype(jnp.int32), (0, Bp - B))
    v_p = jnp.pad(v.astype(jnp.int32), (0, Bp - B))

    # --- bulk gathers directly in lane-dense (Dp, Bp) layout -------------------
    # NOTE: jnp.take clamps out-of-range indices (PyTorch embedding would error).
    ue = jnp.take(ue_table, u_p, axis=1)                    # (Dp, Bp)
    ve = jnp.take(ve_table, v_p, axis=1)                    # (Dp, Bp)
    ub = jnp.take(ub_table, u_p, axis=0)                    # (Bp,)
    vb = jnp.take(vb_table, v_p, axis=0)                    # (Bp,)
    bias = jnp.stack([ub + mu_f, vb], axis=0)               # (2, Bp), mu folded in

    # --- explicit VMEM limit from the tile math --------------------------------
    working = 2 * (2 * Dp * tb * 4)      # double-buffered embedding inputs
    working += 2 * (2 * tb * 4)          # double-buffered bias input
    working += 2 * (1 * tb * 4)          # double-buffered output
    vmem_limit = int(min(max(2 * working + (1 << 20), 4 << 20), 48 << 20))

    grid_spec = pltpu.PrefetchScalarGridSpec(
        num_scalar_prefetch=0,
        grid=(n_tiles,),
        in_specs=[
            pl.BlockSpec((Dp, tb), lambda i: (0, i)),        # user embedding columns
            pl.BlockSpec((Dp, tb), lambda i: (0, i)),        # item embedding columns
            pl.BlockSpec((2, tb), lambda i: (0, i)),         # stacked biases (+mu)
        ],
        out_specs=pl.BlockSpec((1, tb), lambda i: (0, i)),   # lane-dense output
    )

    out = pl.pallas_call(
        _biasmf_kernel,
        out_shape=jax.ShapeDtypeStruct((1, Bp), jnp.float32),
        grid_spec=grid_spec,
        compiler_params=pltpu.CompilerParams(
            dimension_semantics=("parallel",),   # disjoint tiles -> megacore-shardable
            vmem_limit_bytes=vmem_limit,
        ),
    )(ue, ve, bias)

    pred = out[0, :B]
    # PyTorch: pred.squeeze() (drops size-1 dims; 0-d result when B == 1).
    return jnp.squeeze(pred)


def biasmf_reference(u, v, user_embd, item_embd, user_bias, item_bias, mu):
    pred = user_bias[u] + item_bias[v] + mu
    pred = pred + jnp.sum(user_embd[u] * item_embd[v], axis=1, keepdims=True)
    return jnp.squeeze(pred)


if __name__ == "__main__":
    # Deterministic "module init": uniform(0, 0.5) embeddings, uniform(0, 0.2) biases.
    n_users, n_items, embd_dim = 64, 96, 32
    data_mean = 3.5

    key = jax.random.PRNGKey(0)
    k_ue, k_ie, k_ub, k_ib, k_u, k_v = jax.random.split(key, 6)

    user_embd = jax.random.uniform(k_ue, (n_users, embd_dim), jnp.float32, 0.0, 0.5)
    item_embd = jax.random.uniform(k_ie, (n_items, embd_dim), jnp.float32, 0.0, 0.5)
    user_bias = jax.random.uniform(k_ub, (n_users, 1), jnp.float32, 0.0, 0.2)
    item_bias = jax.random.uniform(k_ib, (n_items, 1), jnp.float32, 0.0, 0.2)

    # --- small-batch check (single tile after padding) --------------------------
    batch = 8
    u = jax.random.randint(k_u, (batch,), 0, n_users, dtype=jnp.int32)
    v = jax.random.randint(k_v, (batch,), 0, n_items, dtype=jnp.int32)

    out = biasmf_forward(u, v, user_embd, item_embd, user_bias, item_bias, data_mean)
    out = jax.block_until_ready(out)
    ref = biasmf_reference(u, v, user_embd, item_embd, user_bias, item_bias, data_mean)
    assert out.shape == ref.shape, (out.shape, ref.shape)
    assert jnp.allclose(out, ref, atol=1e-5, rtol=1e-5), (out, ref)

    # --- multi-tile check (exercises grid > 1, batch padding, megacore cap) -----
    batch2 = 300
    k_u2, k_v2 = jax.random.split(jax.random.PRNGKey(1), 2)
    u2 = jax.random.randint(k_u2, (batch2,), 0, n_users, dtype=jnp.int32)
    v2 = jax.random.randint(k_v2, (batch2,), 0, n_items, dtype=jnp.int32)

    out2 = biasmf_forward(u2, v2, user_embd, item_embd, user_bias, item_bias, data_mean)
    out2 = jax.block_until_ready(out2)
    ref2 = biasmf_reference(u2, v2, user_embd, item_embd, user_bias, item_bias, data_mean)
    assert out2.shape == ref2.shape, (out2.shape, ref2.shape)
    assert jnp.allclose(out2, ref2, atol=1e-5, rtol=1e-5), (out2, ref2)

    # --- explicit-tile check (forces a specific tb, grid of 3) ------------------
    out3 = biasmf_forward(u2, v2, user_embd, item_embd, user_bias, item_bias,
                          data_mean, tb=128)
    out3 = jax.block_until_ready(out3)
    assert jnp.allclose(out3, ref2, atol=1e-5, rtol=1e-5), (out3, ref2)

    print("KERNEL_OK")
</pallas_src>

<mosaic_0001>
module attributes {stable_mosaic.version = 11 : i64} {
  func.func @_biasmf_kernel(%arg0: i32, %arg1: memref<32x128xf32, #tpu.memory_space<vmem>>, %arg2: memref<32x128xf32, #tpu.memory_space<vmem>>, %arg3: memref<2x128xf32, #tpu.memory_space<vmem>>, %arg4: memref<1x128xf32, #tpu.memory_space<vmem>>) attributes {dimension_semantics = [#tpu.dimension_semantics<parallel>], iteration_bounds = array<i64: 1>, scalar_prefetch = 0 : i64, scratch_operands = 0 : i64, tpu.core_type = #tpu.core_type<tc>, window_params = [{transform_indices = @transform_0, window_bounds = array<i64: 32, 128>}, {transform_indices = @transform_1, window_bounds = array<i64: 32, 128>}, {transform_indices = @transform_2, window_bounds = array<i64: 2, 128>}, {transform_indices = @transform_3, window_bounds = array<i64: 1, 128>}]} {
    %c0 = arith.constant 0 : index
    %c0_0 = arith.constant 0 : index
    %0 = vector.load %arg1[%c0, %c0_0] : memref<32x128xf32, #tpu.memory_space<vmem>>, vector<32x128xf32>
    %c0_1 = arith.constant 0 : index
    %c0_2 = arith.constant 0 : index
    %1 = vector.load %arg2[%c0_1, %c0_2] : memref<32x128xf32, #tpu.memory_space<vmem>>, vector<32x128xf32>
    %2 = arith.mulf %0, %1 : vector<32x128xf32>
    %cst = arith.constant dense<0.000000e+00> : vector<128xf32>
    %3 = vector.multi_reduction <add>, %2, %cst [0] : vector<32x128xf32> to vector<128xf32>
    %4 = vector.shape_cast %3 : vector<128xf32> to vector<1x128xf32>
    %c0_3 = arith.constant 0 : index
    %c0_4 = arith.constant 0 : index
    %5 = vector.load %arg3[%c0_3, %c0_4] : memref<2x128xf32, #tpu.memory_space<vmem>>, vector<1x128xf32>
    %c1 = arith.constant 1 : index
    %c0_5 = arith.constant 0 : index
    %6 = vector.load %arg3[%c1, %c0_5] : memref<2x128xf32, #tpu.memory_space<vmem>>, vector<1x128xf32>
    %7 = arith.addf %5, %6 : vector<1x128xf32>
    %8 = arith.addf %7, %4 : vector<1x128xf32>
    %c0_6 = arith.constant 0 : index
    %c0_7 = arith.constant 0 : index
    %9 = vector.load %arg4[%c0_6, %c0_7] : memref<1x128xf32, #tpu.memory_space<vmem>>, vector<1x128xf32>
    tpu.vector_store %arg4[%c0_6, %c0_7], %8 {strides = array<i32>} : memref<1x128xf32, #tpu.memory_space<vmem>>, vector<1x128xf32>,
    return
  }
  func.func @transform_0(%arg0: i32) -> (i32, i32) {
    %c0_i32 = arith.constant 0 : i32
    %c0_i32_0 = arith.constant 0 : i32
    return %c0_i32, %arg0 : i32, i32
  }
  func.func @transform_1(%arg0: i32) -> (i32, i32) {
    %c0_i32 = arith.constant 0 : i32
    %c0_i32_0 = arith.constant 0 : i32
    return %c0_i32, %arg0 : i32, i32
  }
  func.func @transform_2(%arg0: i32) -> (i32, i32) {
    %c0_i32 = arith.constant 0 : i32
    %c0_i32_0 = arith.constant 0 : i32
    return %c0_i32, %arg0 : i32, i32
  }
  func.func @transform_3(%arg0: i32) -> (i32, i32) {
    %c0_i32 = arith.constant 0 : i32
    %c0_i32_0 = arith.constant 0 : i32
    return %c0_i32, %arg0 : i32, i32
  }
}

</mosaic_0001>

<llo_original>
// kernel: tpu_custom_call.1
$region0: #{tpu_custom_call.1}
  #allocation0 [shape = 'u32[]', space=smem, size = 0x4, offset = 0x4, fixed_abs, tag = 'smem constant byte address 0x4 - core index']
  #allocation1 [shape = 'u32[72,128]{1,0:T(1,128)}', space=vmem, size = 0x9000, scoped, tag = 'internal scratch']
  %s0 = inlined_call_operand.hbm [shape: f32[32,128], index: 0, kind: input, shape index: {}]
  %s1 = inlined_call_operand.hbm [shape: f32[32,128], index: 1, kind: input, shape index: {}]
  %s2 = inlined_call_operand.hbm [shape: f32[2,128], index: 2, kind: input, shape index: {}]
  %s3 = inlined_call_operand.hbm [shape: f32[1,128], index: 3, kind: output, shape index: {}]
  %s4 = sld [smem:[#allocation0]]
  $region34: #{tpu_custom_call.1} parent=0
    _
  %s6 = ssub.s32 1, %s4
  %s7 = scalar_select 0, %s6, %s4
  $region1: #{tpu_custom_call.1} parent=0
    #allocation2 [shape = 'u8[16384]{0}', space=vmem, size = 0x4000, scoped, tag = 'input window, operand 0, single buffered']
    #allocation3 [shape = 's32[1]{0}', space=sflag, size = 0x4, scoped, tag = 'scoped memory for tpu_custom_call.1']
    #allocation4 [shape = 's32[1]{0}', space=sflag, size = 0x4, scoped, tag = 'scoped memory for tpu_custom_call.1']
    #allocation5 [shape = 'u8[16384]{0}', space=vmem, size = 0x4000, scoped, tag = 'input window, operand 1, single buffered']
    #allocation6 [shape = 's32[1]{0}', space=sflag, size = 0x4, scoped, tag = 'scoped memory for tpu_custom_call.1']
    #allocation7 [shape = 'u8[1024]{0}', space=vmem, size = 0x400, scoped, tag = 'input window, operand 2, single buffered']
    #allocation8 [shape = 'u8[512]{0}', space=vmem, size = 0x400, scoped, tag = 'output window, operand 0, single buffered']
    %8 = vsyncpa [#allocation3], 0
    %9 = vsyncpa [#allocation6], 0
    %10 = vsyncpa [#allocation4], 0
    // Predicated region
    $region2: #{tpu_custom_call.1} parent=1 // pred_check
      _
    $region3: #{tpu_custom_call.1} parent=1 // pred_check_branch
      %12 = sbr.rel (0) target = $region5
    $region4: #{tpu_custom_call.1} parent=1 // pred_region
      %14 = vsyncadd [#allocation3], 0
      %s15 = sshll.u32 %s0, 4
      %s16 = int_to_ptr.hbm [resolvable:$true] %s15
      %s17 = sshll.u32 [#allocation2], 4
      %s18 = int_to_ptr.vmem [resolvable:$true] %s17
      %23 = dma.hbm_to_vmem [thread:$0]  %s16, 512, %s18, [#allocation3], 128, 128, 8
    $region5: #{tpu_custom_call.1} parent=1 // pred_fallthru
      _
    // Predicated region
    $region6: #{tpu_custom_call.1} parent=1 // pred_check
      _
    $region7: #{tpu_custom_call.1} parent=1 // pred_check_branch
      %25 = sbr.rel (0) target = $region9
    $region8: #{tpu_custom_call.1} parent=1 // pred_region
      %27 = vsyncadd [#allocation6], 0
      %s28 = sshll.u32 %s1, 4
      %s29 = int_to_ptr.hbm [resolvable:$true] %s28
      %s30 = sshll.u32 [#allocation5], 4
      %s31 = int_to_ptr.vmem [resolvable:$true] %s30
      %36 = dma.hbm_to_vmem [thread:$0]  %s29, 512, %s31, [#allocation6], 128, 128, 8
    $region9: #{tpu_custom_call.1} parent=1 // pred_fallthru
      _
    // Predicated region
    $region10: #{tpu_custom_call.1} parent=1 // pred_check
      _
    $region11: #{tpu_custom_call.1} parent=1 // pred_check_branch
      %38 = sbr.rel (0) target = $region13
    $region12: #{tpu_custom_call.1} parent=1 // pred_region
      %40 = vsyncadd [#allocation6], 0
      %s42 = sshll.u32 %s2, 4
      %s43 = int_to_ptr.hbm [resolvable:$true] %s42
      %s44 = sshll.u32 [#allocation7], 4
      %s45 = int_to_ptr.vmem [resolvable:$true] %s44
      %47 = dma.hbm_to_vmem [thread:$0]  %s43, 32, %s45, [#allocation6]
    $region13: #{tpu_custom_call.1} parent=1 // pred_fallthru
      _
    // Predicated region
    $region14: #{tpu_custom_call.1} parent=1 // pred_check
      _
    $region15: #{tpu_custom_call.1} parent=1 // pred_check_branch
      %49 = sbr.rel (0) target = $region17
    $region16: #{tpu_custom_call.1} parent=1 // pred_region
      %51 = dma.done [#allocation3], 512
    $region17: #{tpu_custom_call.1} parent=1 // pred_fallthru
      _
    // Predicated region
    $region18: #{tpu_custom_call.1} parent=1 // pred_check
      _
    $region19: #{tpu_custom_call.1} parent=1 // pred_check_branch
      %53 = sbr.rel (0) target = $region21
    $region20: #{tpu_custom_call.1} parent=1 // pred_region
      %55 = dma.done [#allocation6], 512
    $region21: #{tpu_custom_call.1} parent=1 // pred_fallthru
      _
    // Predicated region
    $region22: #{tpu_custom_call.1} parent=1 // pred_check
      _
    $region23: #{tpu_custom_call.1} parent=1 // pred_check_branch
      %57 = sbr.rel (0) target = $region25
    $region24: #{tpu_custom_call.1} parent=1 // pred_region
      %59 = dma.done [#allocation6], 32
    $region25: #{tpu_custom_call.1} parent=1 // pred_fallthru
      _
    %v60 = vld [vmem:[#allocation2] sm:$0xff]
    %v61 = vld [vmem:[#allocation2 + $0x8] sm:$0xff]
    %v62 = vld [vmem:[#allocation2 + $0x10] sm:$0xff]
    %v63 = vld [vmem:[#allocation2 + $0x18] sm:$0xff]
    %v64 = vld [vmem:[#allocation5] sm:$0xff]
    %v65 = vld [vmem:[#allocation5 + $0x8] sm:$0xff]
    %v66 = vld [vmem:[#allocation5 + $0x10] sm:$0xff]
    %v67 = vld [vmem:[#allocation5 + $0x18] sm:$0xff]
    %v68 = vmul.f32 %v60, %v64
    %v69 = vmul.f32 %v61, %v65
    %v70 = vmul.f32 %v62, %v66
    %v71 = vmul.f32 %v63, %v67
    %v72 = vadd.f32 %v68, %v69
    %v73 = vadd.f32 %v72, %v70
    %v74 = vadd.f32 %v73, %v71
    %v75 = vrot.slane %v74, 4
    %v76 = vadd.f32 %v74, %v75
    %v77 = vrot.slane %v76, 2
    %v78 = vadd.f32 %v76, %v77
    %v79 = vrot.slane %v78, 1
    %v80 = vadd.f32 %v78, %v79
    %v81 = vld [vmem:[#allocation7] sm:$0x1]
    %v82 = vld [vmem:[#allocation7 + $0x1] sm:$0x1]
    %v83 = vadd.f32 %v81, %v82
    %v84 = vadd.f32 %v83, %v80
    %85 = vst [vmem:[#allocation8] sm:$0x1] %v84
    // Predicated region
    $region26: #{tpu_custom_call.1} parent=1 // pred_check
      _
    $region27: #{tpu_custom_call.1} parent=1 // pred_check_branch
      %87 = sbr.rel (0) target = $region29
    $region28: #{tpu_custom_call.1} parent=1 // pred_region
      %89 = vsyncadd [#allocation4], 0
      %s91 = sshll.u32 [#allocation8], 4
      %s92 = int_to_ptr.vmem [resolvable:$true] %s91
      %s93 = sshll.u32 %s3, 4
      %s94 = int_to_ptr.hbm [resolvable:$true] %s93
      %96 = dma.vmem_to_hbm [thread:$0]  %s92, 16, %s94, [#allocation4]
    $region29: #{tpu_custom_call.1} parent=1 // pred_fallthru
      _
    // Predicated region
    $region30: #{tpu_custom_call.1} parent=1 // pred_check
      _
    $region31: #{tpu_custom_call.1} parent=1 // pred_check_branch
      %98 = sbr.rel (0) target = $region33
    $region32: #{tpu_custom_call.1} parent=1 // pred_region
      %100 = dma.done [#allocation4], 16
    $region33: #{tpu_custom_call.1} parent=1 // pred_fallthru
      _
    %101 = vsyncpa [#allocation3], 1
    %102 = vsyncpa [#allocation6], 1
    %103 = vsyncpa [#allocation4], 1

</llo_original>
